<compile_context>
chip_gen: v6e
topology: v6e:2x2x1
jax: 0.10.0
libtpu: 0.0.40
codegen_flags: <defaults>
</compile_context>

<pallas_src>
import jax
import jax.numpy as jnp
from jax import lax
from jax.experimental import pallas as pl
from jax.experimental.pallas import tpu as pltpu
import numpy as np


def encoder_rnn_step_kernel(ids_ref, emb_wih_ref, w_hh_ref, b_ref,
                            h0_ref, c0_ref, h1_ref, c1_ref):
    B = ids_ref.shape[0]
    V = emb_wih_ref.shape[0]
    H = h0_ref.shape[1]

    # --- one-hot row selector (VPU); gather happens implicitly on the MXU ---
    ids = ids_ref[...]                                          # (B, 1) int32
    col = lax.broadcasted_iota(jnp.int32, (B, V), 1)            # (B, V)
    onehot = (col == ids).astype(jnp.float32)                   # (B, V)

    # --- single LSTM step: two MXU matmuls (embedding+input proj are folded) ---
    h0 = h0_ref[...]
    c0 = c0_ref[...]
    gates = (jnp.dot(onehot, emb_wih_ref[...], preferred_element_type=jnp.float32)
             + jnp.dot(h0, w_hh_ref[...], preferred_element_type=jnp.float32)
             + b_ref[...])                                      # (B, 4H)

    # PyTorch gate order: i, f, g, o.
    # (H=32 => sub-128-lane slices of one vreg; negligible at this size.
    #  If H is scaled to >=128 keep these slices 128-lane aligned.)
    i_g = jax.nn.sigmoid(gates[:, 0 * H:1 * H])
    f_g = jax.nn.sigmoid(gates[:, 1 * H:2 * H])
    g_g = jnp.tanh(gates[:, 2 * H:3 * H])
    o_g = jax.nn.sigmoid(gates[:, 3 * H:4 * H])

    c1 = f_g * c0 + i_g * g_g
    h1 = o_g * jnp.tanh(c1)

    h1_ref[...] = h1
    c1_ref[...] = c1


def prepare_encoder_params(emb, w_ih, w_hh, b_ih, b_hh):
    """One-time weight preparation (hoisted out of the per-call path).

    emb : (V, H)   nn.Embedding weight
    w_ih: (4H, H), w_hh: (4H, H), b_ih: (4H,), b_hh: (4H,)   nn.LSTM l0 params
    Returns (emb_wih, w_hh_t, b):
      emb_wih : (V, 4H)  = emb @ W_ih^T   (embedding folded into input proj)
      w_hh_t  : (H, 4H)
      b       : (1, 4H)  = b_ih + b_hh
    """
    emb = jnp.asarray(emb, jnp.float32)
    w_ih_t = jnp.asarray(w_ih, jnp.float32).T                    # (H, 4H)
    w_hh_t = jnp.asarray(w_hh, jnp.float32).T                    # (H, 4H)
    emb_wih = emb @ w_ih_t                                       # (V, 4H)
    b = (jnp.asarray(b_ih, jnp.float32)
         + jnp.asarray(b_hh, jnp.float32)).reshape(1, -1)        # (1, 4H)
    return emb_wih, w_hh_t, b


def encoder_rnn_forward(ids, params, h0, c0):
    """Mirrors EncoderRNN.forward(input, hidden) with LSTM='LSTM', num_layers=1.

    ids    : (B,) int token indices
    params : output of prepare_encoder_params
    h0, c0 : (1, B, H)
    Returns (output, (h1, c1)) with output (1, B, H), h1/c1 (1, B, H).
    """
    emb_wih, w_hh_t, b = params
    B = ids.shape[0]
    H = w_hh_t.shape[0]

    ids2 = ids.reshape(B, 1).astype(jnp.int32)
    h0_2 = h0.reshape(B, H).astype(jnp.float32)
    c0_2 = c0.reshape(B, H).astype(jnp.float32)

    vmem = pl.BlockSpec(memory_space=pltpu.MemorySpace.VMEM)

    h1, c1 = pl.pallas_call(
        encoder_rnn_step_kernel,
        out_shape=(
            jax.ShapeDtypeStruct((B, H), jnp.float32),
            jax.ShapeDtypeStruct((B, H), jnp.float32),
        ),
        in_specs=[vmem, vmem, vmem, vmem, vmem, vmem],
        out_specs=(vmem, vmem),
    )(ids2, emb_wih, w_hh_t, b, h0_2, c0_2)

    h1_3 = h1.reshape(1, B, H)
    c1_3 = c1.reshape(1, B, H)
    # seq_len == 1  =>  output of the LSTM is exactly h1 (no extra DMA/write).
    return h1_3, (h1_3, c1_3)


def _reference(ids, emb, w_ih, w_hh, b_ih, b_hh, h0, c0):
    # Pure-JAX reference matching PyTorch nn.Embedding + nn.LSTM (1 layer, seq=1).
    B = ids.shape[0]
    H = emb.shape[1]
    x = emb[ids]                                   # (B, H)
    h0_2 = h0.reshape(B, H)
    c0_2 = c0.reshape(B, H)
    gates = x @ w_ih.T + h0_2 @ w_hh.T + b_ih + b_hh
    i_g = jax.nn.sigmoid(gates[:, 0 * H:1 * H])
    f_g = jax.nn.sigmoid(gates[:, 1 * H:2 * H])
    g_g = jnp.tanh(gates[:, 2 * H:3 * H])
    o_g = jax.nn.sigmoid(gates[:, 3 * H:4 * H])
    c1 = f_g * c0_2 + i_g * g_g
    h1 = o_g * jnp.tanh(c1)
    return h1.reshape(1, B, H), (h1.reshape(1, B, H), c1.reshape(1, B, H))


if __name__ == "__main__":
    VOCAB = 50     # input_size
    HIDDEN = 32    # hidden_size
    BATCH = 4
    NUM_LAYERS = 1

    key = jax.random.PRNGKey(0)
    k_emb, k_wih, k_whh, k_bih, k_bhh, k_ids = jax.random.split(key, 6)

    # Deterministic synthetic parameters (shapes from nn.Embedding / nn.LSTM).
    emb = 0.1 * jax.random.normal(k_emb, (VOCAB, HIDDEN), jnp.float32)
    w_ih = 0.1 * jax.random.normal(k_wih, (4 * HIDDEN, HIDDEN), jnp.float32)
    w_hh = 0.1 * jax.random.normal(k_whh, (4 * HIDDEN, HIDDEN), jnp.float32)
    b_ih = 0.1 * jax.random.normal(k_bih, (4 * HIDDEN,), jnp.float32)
    b_hh = 0.1 * jax.random.normal(k_bhh, (4 * HIDDEN,), jnp.float32)

    ids = jax.random.randint(k_ids, (BATCH,), 0, VOCAB, jnp.int32)

    # initHidden() equivalent: zeros (num_layers, batch, hidden) for h and c.
    h0 = jnp.zeros((NUM_LAYERS, BATCH, HIDDEN), jnp.float32)
    c0 = jnp.zeros((NUM_LAYERS, BATCH, HIDDEN), jnp.float32)

    # One-time parameter prep (amortized across all subsequent forward calls).
    params = prepare_encoder_params(emb, w_ih, w_hh, b_ih, b_hh)
    params = jax.block_until_ready(params)

    output, (h1, c1) = encoder_rnn_forward(ids, params, h0, c0)
    jax.block_until_ready((output, h1, c1))

    ref_out, (ref_h1, ref_c1) = _reference(ids, emb, w_ih, w_hh, b_ih, b_hh, h0, c0)
    np.testing.assert_allclose(np.asarray(output), np.asarray(ref_out), rtol=1e-5, atol=1e-5)
    np.testing.assert_allclose(np.asarray(h1), np.asarray(ref_h1), rtol=1e-5, atol=1e-5)
    np.testing.assert_allclose(np.asarray(c1), np.asarray(ref_c1), rtol=1e-5, atol=1e-5)

    print("KERNEL_OK")
</pallas_src>

<mosaic_0001>
module attributes {stable_mosaic.version = 11 : i64} {
  func.func @encoder_rnn_step_kernel(%arg0: memref<4x1xi32, #tpu.memory_space<vmem>>, %arg1: memref<50x128xf32, #tpu.memory_space<vmem>>, %arg2: memref<32x128xf32, #tpu.memory_space<vmem>>, %arg3: memref<1x128xf32, #tpu.memory_space<vmem>>, %arg4: memref<4x32xf32, #tpu.memory_space<vmem>>, %arg5: memref<4x32xf32, #tpu.memory_space<vmem>>, %arg6: memref<4x32xf32, #tpu.memory_space<vmem>>, %arg7: memref<4x32xf32, #tpu.memory_space<vmem>>) attributes {dimension_semantics = [], scalar_prefetch = 0 : i64, scratch_operands = 0 : i64, tpu.core_type = #tpu.core_type<tc>} {
    %c0 = arith.constant 0 : index
    %c0_0 = arith.constant 0 : index
    %0 = vector.load %arg0[%c0, %c0_0] : memref<4x1xi32, #tpu.memory_space<vmem>>, vector<4x1xi32>
    %1 = tpu.iota {dimensions = array<i32: 1>} : vector<4x50xi32>
    %2 = vector.broadcast %0 : vector<4x1xi32> to vector<4x50xi32>
    %3 = arith.cmpi eq, %1, %2 : vector<4x50xi32>
    %4 = arith.extui %3 : vector<4x50xi1> to vector<4x50xi32>
    %5 = arith.sitofp %4 : vector<4x50xi32> to vector<4x50xf32>
    %c0_1 = arith.constant 0 : index
    %c0_2 = arith.constant 0 : index
    %6 = vector.load %arg4[%c0_1, %c0_2] : memref<4x32xf32, #tpu.memory_space<vmem>>, vector<4x32xf32>
    %c0_3 = arith.constant 0 : index
    %c0_4 = arith.constant 0 : index
    %7 = vector.load %arg5[%c0_3, %c0_4] : memref<4x32xf32, #tpu.memory_space<vmem>>, vector<4x32xf32>
    %c0_5 = arith.constant 0 : index
    %c0_6 = arith.constant 0 : index
    %8 = vector.load %arg1[%c0_5, %c0_6] : memref<50x128xf32, #tpu.memory_space<vmem>>, vector<50x128xf32>
    %cst = arith.constant dense<0.000000e+00> : vector<4x128xf32>
    %9 = tpu.matmul %5, %8, %cst {dimension_numbers = #tpu.dot_dimension_numbers<[1], [0], [0], [1], [0, 0, 1, 1], [], []>} : vector<4x50xf32>, vector<50x128xf32>, vector<4x128xf32> -> vector<4x128xf32>
    %c0_7 = arith.constant 0 : index
    %c0_8 = arith.constant 0 : index
    %10 = vector.load %arg2[%c0_7, %c0_8] : memref<32x128xf32, #tpu.memory_space<vmem>>, vector<32x128xf32>
    %cst_9 = arith.constant dense<0.000000e+00> : vector<4x128xf32>
    %11 = tpu.matmul %6, %10, %cst_9 {dimension_numbers = #tpu.dot_dimension_numbers<[1], [0], [0], [1], [0, 0, 1, 1], [], []>} : vector<4x32xf32>, vector<32x128xf32>, vector<4x128xf32> -> vector<4x128xf32>
    %12 = arith.addf %9, %11 : vector<4x128xf32>
    %c0_10 = arith.constant 0 : index
    %c0_11 = arith.constant 0 : index
    %13 = vector.load %arg3[%c0_10, %c0_11] : memref<1x128xf32, #tpu.memory_space<vmem>>, vector<1x128xf32>
    %14 = vector.broadcast %13 : vector<1x128xf32> to vector<4x128xf32>
    %15 = arith.addf %12, %14 : vector<4x128xf32>
    %16 = vector.extract_strided_slice %15 {offsets = [0, 0], sizes = [4, 32], strides = [1, 1]} : vector<4x128xf32> to vector<4x32xf32>
    %17 = arith.negf %16 : vector<4x32xf32>
    %18 = math.exp %17 : vector<4x32xf32>
    %cst_12 = arith.constant 1.000000e+00 : f32
    %19 = vector.broadcast %cst_12 : f32 to vector<4x32xf32>
    %20 = arith.addf %19, %18 : vector<4x32xf32>
    %21 = arith.divf %19, %20 : vector<4x32xf32>
    %22 = vector.extract_strided_slice %15 {offsets = [0, 32], sizes = [4, 32], strides = [1, 1]} : vector<4x128xf32> to vector<4x32xf32>
    %23 = arith.negf %22 : vector<4x32xf32>
    %24 = math.exp %23 : vector<4x32xf32>
    %cst_13 = arith.constant 1.000000e+00 : f32
    %25 = vector.broadcast %cst_13 : f32 to vector<4x32xf32>
    %26 = arith.addf %25, %24 : vector<4x32xf32>
    %27 = arith.divf %25, %26 : vector<4x32xf32>
    %28 = vector.extract_strided_slice %15 {offsets = [0, 64], sizes = [4, 32], strides = [1, 1]} : vector<4x128xf32> to vector<4x32xf32>
    %29 = math.tanh %28 : vector<4x32xf32>
    %30 = vector.extract_strided_slice %15 {offsets = [0, 96], sizes = [4, 32], strides = [1, 1]} : vector<4x128xf32> to vector<4x32xf32>
    %31 = arith.negf %30 : vector<4x32xf32>
    %32 = math.exp %31 : vector<4x32xf32>
    %cst_14 = arith.constant 1.000000e+00 : f32
    %33 = vector.broadcast %cst_14 : f32 to vector<4x32xf32>
    %34 = arith.addf %33, %32 : vector<4x32xf32>
    %35 = arith.divf %33, %34 : vector<4x32xf32>
    %36 = arith.mulf %27, %7 : vector<4x32xf32>
    %37 = arith.mulf %21, %29 : vector<4x32xf32>
    %38 = arith.addf %36, %37 : vector<4x32xf32>
    %39 = math.tanh %38 : vector<4x32xf32>
    %40 = arith.mulf %35, %39 : vector<4x32xf32>
    %c0_15 = arith.constant 0 : index
    %c0_16 = arith.constant 0 : index
    %41 = vector.load %arg6[%c0_15, %c0_16] : memref<4x32xf32, #tpu.memory_space<vmem>>, vector<4x32xf32>
    tpu.vector_store %arg6[%c0_15, %c0_16], %40 {strides = array<i32>} : memref<4x32xf32, #tpu.memory_space<vmem>>, vector<4x32xf32>,
    %c0_17 = arith.constant 0 : index
    %c0_18 = arith.constant 0 : index
    %42 = vector.load %arg7[%c0_17, %c0_18] : memref<4x32xf32, #tpu.memory_space<vmem>>, vector<4x32xf32>
    tpu.vector_store %arg7[%c0_17, %c0_18], %38 {strides = array<i32>} : memref<4x32xf32, #tpu.memory_space<vmem>>, vector<4x32xf32>,
    return
  }
}

</mosaic_0001>

<llo_original>
// kernel: tpu_custom_call.1
$region0: #{tpu_custom_call.1}
  #allocation0 [shape = 'u32[]', space=smem, size = 0x4, offset = 0x4, fixed_abs, tag = 'smem constant byte address 0x4 - core index']
  #allocation1 [shape = 'u32[144,128]{1,0:T(1,128)}', space=vmem, size = 0x12000, scoped, tag = 'internal scratch']
  %s0 = inlined_call_operand.vmem [shape: s32[4,1], index: 0, kind: input, shape index: {}]
  %s1 = inlined_call_operand.hbm [shape: f32[50,128], index: 1, kind: input, shape index: {}]
  %s2 = inlined_call_operand.hbm [shape: f32[32,128], index: 2, kind: input, shape index: {}]
  %s3 = inlined_call_operand.vmem [shape: f32[1,128], index: 3, kind: input, shape index: {}]
  %s4 = inlined_call_operand.vmem [shape: f32[4,32], index: 4, kind: input, shape index: {}]
  %s5 = inlined_call_operand.vmem [shape: f32[4,32], index: 5, kind: input, shape index: {}]
  %s6 = inlined_call_operand.hbm [shape: f32[4,32], index: 6, kind: output, shape index: {0}]
  %s7 = inlined_call_operand.hbm [shape: f32[4,32], index: 7, kind: output, shape index: {1}]
  %8 = xla_tuple %s6, %s7
  %s9 = sld [smem:[#allocation0]]
  $region50: #{tpu_custom_call.1} parent=0
    _
  %s11 = ssub.s32 1, %s9
  %s12 = scalar_select 0, %s11, %s9
  $region1: #{tpu_custom_call.1} parent=0
    #allocation2 [shape = 'u8[28672]{0}', space=vmem, size = 0x7000, scoped, tag = 'input window, operand 1, single buffered']
    #allocation3 [shape = 's32[1]{0}', space=sflag, size = 0x4, scoped, tag = 'scoped memory for tpu_custom_call.1']
    #allocation4 [shape = 's32[1]{0}', space=sflag, size = 0x4, scoped, tag = 'scoped memory for tpu_custom_call.1']
    #allocation5 [shape = 'u8[16384]{0}', space=vmem, size = 0x4000, scoped, tag = 'input window, operand 2, single buffered']
    #allocation6 [shape = 's32[1]{0}', space=sflag, size = 0x4, scoped, tag = 'scoped memory for tpu_custom_call.1']
    #allocation7 [shape = 'u8[2048]{0}', space=vmem, size = 0x800, scoped, tag = 'output window, operand 0, single buffered']
    #allocation8 [shape = 'u8[2048]{0}', space=vmem, size = 0x800, scoped, tag = 'output window, operand 1, single buffered']
    #allocation9 [shape = 's32[1]{0}', space=sflag, size = 0x4, scoped, tag = 'scoped memory for tpu_custom_call.1']
    %13 = vsyncpa [#allocation3], 0
    %14 = vsyncpa [#allocation6], 0
    %15 = vsyncpa [#allocation4], 0
    %16 = vsyncpa [#allocation9], 0
    // Predicated region
    $region2: #{tpu_custom_call.1} parent=1 // pred_check
      _
    $region3: #{tpu_custom_call.1} parent=1 // pred_check_branch
      %18 = sbr.rel (0) target = $region5
    $region4: #{tpu_custom_call.1} parent=1 // pred_region
      _
    $region5: #{tpu_custom_call.1} parent=1 // pred_fallthru
      _
    // Predicated region
    $region6: #{tpu_custom_call.1} parent=1 // pred_check
      _
    $region7: #{tpu_custom_call.1} parent=1 // pred_check_branch
      %20 = sbr.rel (0) target = $region9
    $region8: #{tpu_custom_call.1} parent=1 // pred_region
      %s22 = ssub.s32 896, 896
      %23 = vsyncadd [#allocation3], %s22
      %s24 = sshll.u32 [#allocation2], 4
      %s25 = int_to_ptr.vmem [resolvable:$true] %s24
      %30 = dma.hbm_to_vmem [thread:$0]  %s1, 896, %s25, [#allocation3], 128, 128, 8
    $region9: #{tpu_custom_call.1} parent=1 // pred_fallthru
      _
    // Predicated region
    $region10: #{tpu_custom_call.1} parent=1 // pred_check
      _
    $region11: #{tpu_custom_call.1} parent=1 // pred_check_branch
      %32 = sbr.rel (0) target = $region13
    $region12: #{tpu_custom_call.1} parent=1 // pred_region
      %s34 = ssub.s32 512, 512
      %35 = vsyncadd [#allocation6], %s34
      %s36 = sshll.u32 [#allocation5], 4
      %s37 = int_to_ptr.vmem [resolvable:$true] %s36
      %42 = dma.hbm_to_vmem [thread:$0]  %s2, 512, %s37, [#allocation6], 128, 128, 8
    $region13: #{tpu_custom_call.1} parent=1 // pred_fallthru
      _
    // Predicated region
    $region14: #{tpu_custom_call.1} parent=1 // pred_check
      _
    $region15: #{tpu_custom_call.1} parent=1 // pred_check_branch
      %44 = sbr.rel (0) target = $region17
    $region16: #{tpu_custom_call.1} parent=1 // pred_region
      _
    $region17: #{tpu_custom_call.1} parent=1 // pred_fallthru
      _
    // Predicated region
    $region18: #{tpu_custom_call.1} parent=1 // pred_check
      _
    $region19: #{tpu_custom_call.1} parent=1 // pred_check_branch
      %46 = sbr.rel (0) target = $region21
    $region20: #{tpu_custom_call.1} parent=1 // pred_region
      _
    $region21: #{tpu_custom_call.1} parent=1 // pred_fallthru
      _
    // Predicated region
    $region22: #{tpu_custom_call.1} parent=1 // pred_check
      _
    $region23: #{tpu_custom_call.1} parent=1 // pred_check_branch
      %48 = sbr.rel (0) target = $region25
    $region24: #{tpu_custom_call.1} parent=1 // pred_region
      _
    $region25: #{tpu_custom_call.1} parent=1 // pred_fallthru
      _
    // Predicated region
    $region26: #{tpu_custom_call.1} parent=1 // pred_check
      _
    $region27: #{tpu_custom_call.1} parent=1 // pred_check_branch
      %50 = sbr.rel (0) target = $region29
    $region28: #{tpu_custom_call.1} parent=1 // pred_region
      %51 = dma.done [#allocation3], 896
    $region29: #{tpu_custom_call.1} parent=1 // pred_fallthru
      _
    // Predicated region
    $region30: #{tpu_custom_call.1} parent=1 // pred_check
      _
    $region31: #{tpu_custom_call.1} parent=1 // pred_check_branch
      %53 = sbr.rel (0) target = $region33
    $region32: #{tpu_custom_call.1} parent=1 // pred_region
      %54 = dma.done [#allocation6], 512
    $region33: #{tpu_custom_call.1} parent=1 // pred_fallthru
      _
    %v55 = vld [vmem:[%s0] sm:$0xf]
    %v56 = vlaneseq
    %v57 = vand.u32 %v56, 127
    %58 = vset.pattern.permute.xlu0 0
    %59 = vperm.xlu0 %58, %v55
    %v60 = vpop.permute.xlu0 %59
    %vm61 = vcmp.eq.s32.totalorder %v57, %v60
    %v62 = vsel %vm61, 1, 0
    %v63 = vcvt.s32.f32 %v62
    %v64 = vld [vmem:[%s4] sm:$0xf]
    %v65 = vld [vmem:[%s5] sm:$0xf]
    %v66 = vld [vmem:[#allocation2] sm:$0xff]
    %v67 = vld [vmem:[#allocation2 + $0x8] sm:$0xff]
    %v68 = vld [vmem:[#allocation2 + $0x10] sm:$0xff]
    %v69 = vld [vmem:[#allocation2 + $0x18] sm:$0xff]
    %v70 = vld [vmem:[#allocation2 + $0x20] sm:$0xff]
    %v71 = vld [vmem:[#allocation2 + $0x28] sm:$0xff]
    %v72 = vld [vmem:[#allocation2 + $0x30] sm:$0x3]
    %v73 = vld [vmem:[#allocation5] sm:$0xff]
    %v74 = vld [vmem:[#allocation5 + $0x8] sm:$0xff]
    %v75 = vld [vmem:[#allocation5 + $0x10] sm:$0xff]
    %v76 = vld [vmem:[#allocation5 + $0x18] sm:$0xff]
    %vm77 = vcmask 261120
    %v79 = vsel %vm77, %v64, 0
    %81 = vmatprep.subr.mxu0 0.0
    %82 = vmatpush1.msra.mxu0 0.0
    %83 = vmatprep.subr.mxu0 0.0
    %84 = vmatpush1.msra.mxu0 0.0
    %85 = vmatprep.subr.mxu0 0.0
    %86 = vmatpush1.msra.mxu0 0.0
    %87 = vmatprep.subr.mxu0 0.0
    %88 = vmatpush1.msra.mxu0 0.0
    %89 = vmatprep.subr.mxu0 0.0
    %90 = vmatpush1.msra.mxu0 0.0
    %91 = vmatprep.subr.mxu0 0.0
    %92 = vmatpush1.msra.mxu0 0.0
    %93 = vmatprep.subr.mxu0 0.0
    %94 = vmatpush1.msra.mxu0 0.0
    %95 = vmatprep.subr.mxu0 0.0
    %96 = vmatpush1.msra.mxu0 0.0
    %97 = vmatprep.subr.mxu0 0.0
    %98 = vmatpush1.msra.mxu0 0.0
    %99 = vmatprep.subr.mxu0 0.0
    %100 = vmatpush1.msra.mxu0 0.0
    %101 = vmatprep.subr.mxu0 0.0
    %102 = vmatpush1.msra.mxu0 0.0
    %103 = vmatprep.subr.mxu0 0.0
    %104 = vmatpush1.msra.mxu0 0.0
    %105 = vmatprep.subr.mxu0 0.0
    %106 = vmatpush1.msra.mxu0 %v76
    %107 = vmatprep.subr.mxu0 0.0
    %108 = vmatpush1.msra.mxu0 %v75
    %109 = vmatprep.subr.mxu0 0.0
    %110 = vmatpush1.msra.mxu0 %v74
    %111 = vmatprep.subr.mxu0 0.0
    %112 = vmatpush1.msra.mxu0 %v73
    %113 = vmatprep.subr.mxu0 0.0
    %114 = vmatpush2.msra.mxu0 0.0
    %115 = vmatprep.subr.mxu0 0.0
    %116 = vmatpush2.msra.mxu0 0.0
    %117 = vmatprep.subr.mxu0 0.0
    %118 = vmatpush2.msra.mxu0 0.0
    %119 = vmatprep.subr.mxu0 0.0
    %120 = vmatpush2.msra.mxu0 0.0
    %121 = vmatprep.subr.mxu0 0.0
    %122 = vmatpush2.msra.mxu0 0.0
    %123 = vmatprep.subr.mxu0 0.0
    %124 = vmatpush2.msra.mxu0 0.0
    %125 = vmatprep.subr.mxu0 0.0
    %126 = vmatpush2.msra.mxu0 0.0
    %127 = vmatprep.subr.mxu0 0.0
    %128 = vmatpush2.msra.mxu0 0.0
    %129 = vmatprep.subr.mxu0 0.0
    %130 = vmatpush2.msra.mxu0 0.0
    %131 = vmatprep.subr.mxu0 0.0
    %132 = vmatpush2.msra.mxu0 0.0
    %133 = vmatprep.subr.mxu0 0.0
    %134 = vmatpush2.msra.mxu0 0.0
    %135 = vmatprep.subr.mxu0 0.0
    %136 = vmatpush2.msra.mxu0 0.0
    %137 = vmatprep.subr.mxu0 0.0
    %138 = vmatpush2.msra.mxu0 0.0
    %139 = vmatprep.subr.mxu0 0.0
    %140 = vmatpush2.msra.mxu0 0.0
    %141 = vmatprep.subr.mxu0 0.0
    %142 = vmatpush2.msra.mxu0 0.0
    %143 = vmatprep.subr.mxu0 0.0
    %144 = vmatpush2.msra.mxu0 0.0
    %145 = vmatprep.mubr.f32.mxu0 0.0
    %146 = vmatmul.mubr.f32.gmra.mxu0 %v79
    %v147 = vpop.f32.mrf.mxu0
    %v148 = vadd.f32 0.0, %v147
    %v149 = vpop.f32.mrf.mxu0
    %150 = vdwg.mxu0
    %vm151 = vcmask 408576
    %v153 = vsel %vm151, %v63, 0
    %vm155 = vcmask 1041408
    %v157 = vsel %vm155, %v72, 0
    %159 = vmatprep.subr.mxu0 0.0
    %160 = vmatpush1.msra.mxu0 0.0
    %161 = vmatprep.subr.mxu0 0.0
    %162 = vmatpush1.msra.mxu0 0.0
    %163 = vmatprep.subr.mxu0 0.0
    %164 = vmatpush1.msra.mxu0 0.0
    %165 = vmatprep.subr.mxu0 0.0
    %166 = vmatpush1.msra.mxu0 0.0
    %167 = vmatprep.subr.mxu0 0.0
    %168 = vmatpush1.msra.mxu0 0.0
    %169 = vmatprep.subr.mxu0 0.0
    %170 = vmatpush1.msra.mxu0 0.0
    %171 = vmatprep.subr.mxu0 0.0
    %172 = vmatpush1.msra.mxu0 0.0
    %173 = vmatprep.subr.mxu0 0.0
    %174 = vmatpush1.msra.mxu0 0.0
    %175 = vmatprep.subr.mxu0 0.0
    %176 = vmatpush1.msra.mxu0 0.0
    %177 = vmatprep.subr.mxu0 0.0
    %178 = vmatpush1.msra.mxu0 %v157
    %179 = vmatprep.subr.mxu0 0.0
    %180 = vmatpush1.msra.mxu0 %v71
    %181 = vmatprep.subr.mxu0 0.0
    %182 = vmatpush1.msra.mxu0 %v70
    %183 = vmatprep.subr.mxu0 0.0
    %184 = vmatpush1.msra.mxu0 %v69
    %185 = vmatprep.subr.mxu0 0.0
    %186 = vmatpush1.msra.mxu0 %v68
    %187 = vmatprep.subr.mxu0 0.0
    %188 = vmatpush1.msra.mxu0 %v67
    %189 = vmatprep.subr.mxu0 0.0
    %190 = vmatpush1.msra.mxu0 %v66
    %191 = vmatprep.subr.mxu0 0.0
    %192 = vmatpush2.msra.mxu0 0.0
    %193 = vmatprep.subr.mxu0 0.0
    %194 = vmatpush2.msra.mxu0 0.0
    %195 = vmatprep.subr.mxu0 0.0
    %196 = vmatpush2.msra.mxu0 0.0
    %197 = vmatprep.subr.mxu0 0.0
    %198 = vmatpush2.msra.mxu0 0.0
    %199 = vmatprep.subr.mxu0 0.0
    %200 = vmatpush2.msra.mxu0 0.0
    %201 = vmatprep.subr.mxu0 0.0
    %202 = vmatpush2.msra.mxu0 0.0
    %203 = vmatprep.subr.mxu0 0.0
    %204 = vmatpush2.msra.mxu0 0.0
    %205 = vmatprep.subr.mxu0 0.0
    %206 = vmatpush2.msra.mxu0 0.0
    %207 = vmatprep.subr.mxu0 0.0
    %208 = vmatpush2.msra.mxu0 0.0
    %209 = vmatprep.subr.mxu0 0.0
    %210 = vmatpush2.msra.mxu0 0.0
    %211 = vmatprep.subr.mxu0 0.0
    %212 = vmatpush2.msra.mxu0 0.0
    %213 = vmatprep.subr.mxu0 0.0
    %214 = vmatpush2.msra.mxu0 0.0
    %215 = vmatprep.subr.mxu0 0.0
    %216 = vmatpush2.msra.mxu0 0.0
    %217 = vmatprep.subr.mxu0 0.0
    %218 = vmatpush2.msra.mxu0 0.0
    %219 = vmatprep.subr.mxu0 0.0
    %220 = vmatpush2.msra.mxu0 0.0
    %221 = vmatprep.subr.mxu0 0.0
    %222 = vmatpush2.msra.mxu0 0.0
    %223 = vmatprep.mubr.f32.mxu0 0.0
    %224 = vmatmul.mubr.f32.gmra.mxu0 %v153
    %v225 = vpop.f32.mrf.mxu0
    %v226 = vadd.f32 %v148, %v225
    %v227 = vpop.f32.mrf.mxu0
    %228 = vdwg.mxu0
    %v229 = vld [vmem:[%s3] sm:$0x1]
    %v231 = vlaneseq
    %v232 = vshrl.u32 %v231, 7
    %v233 = vsub.s32 0, %v232
    %v234 = vrot.slane %v229, %v233
    %v236 = vadd.f32 %v226, %v234
    %v237 = vxor.u32 %v236, 2147483648
    %v238 = vmul.f32 %v237, 1.442695
    %v239 = vpow.pop %v238
    %v240 = vadd.f32 %v239, 1.0
    %v241 = vrcp.pop %v240
    %v242 = vmul.f32 1.0, %v241
    %v243 = vtanh.pop %v236
    %245 = vrot.lane.b32.xlu0 %v65, 32
    %v246 = vpop.permute.xlu0 %245
    %v248 = vmul.f32 %v242, %v246
    %250 = vrot.lane.b32.xlu0 %v243, 64
    %v251 = vpop.permute.xlu0 %250
    %v253 = vmul.f32 %v242, %v251
    %255 = vrot.lane.b32.xlu0 %v253, 32
    %v256 = vpop.permute.xlu0 %255
    %v258 = vadd.f32 %v248, %v256
    %v259 = vtanh.pop %v258
    %261 = vrot.lane.b32.xlu0 %v259, 64
    %v262 = vpop.permute.xlu0 %261
    %v264 = vmul.f32 %v242, %v262
    %266 = vrot.lane.b32.xlu0 %v264, 32
    %v267 = vpop.permute.xlu0 %266
    %vm269 = vcmask 257024
    %270 = vst.msk [vmem:[#allocation7] sm:$0xf] %vm269, %v267
    %272 = vrot.lane.b32.xlu0 %v258, 96
    %v273 = vpop.permute.xlu0 %272
    %275 = vst.msk [vmem:[#allocation8] sm:$0xf] %vm269, %v273
    // Predicated region
    $region34: #{tpu_custom_call.1} parent=1 // pred_check
      _
    $region35: #{tpu_custom_call.1} parent=1 // pred_check_branch
      %277 = sbr.rel (0) target = $region37
    $region36: #{tpu_custom_call.1} parent=1 // pred_region
      %s279 = ssub.s32 64, 64
      %280 = vsyncadd [#allocation4], %s279
      %s282 = sshll.u32 [#allocation7], 4
      %s283 = int_to_ptr.vmem [resolvable:$true] %s282
      %285 = dma.vmem_to_hbm [thread:$0]  %s283, 64, %s6, [#allocation4]
    $region37: #{tpu_custom_call.1} parent=1 // pred_fallthru
      _
    // Predicated region
    $region38: #{tpu_custom_call.1} parent=1 // pred_check
      _
    $region39: #{tpu_custom_call.1} parent=1 // pred_check_branch
      %287 = sbr.rel (0) target = $region41
    $region40: #{tpu_custom_call.1} parent=1 // pred_region
      %s289 = ssub.s32 64, 64
      %290 = vsyncadd [#allocation9], %s289
      %s292 = sshll.u32 [#allocation8], 4
      %s293 = int_to_ptr.vmem [resolvable:$true] %s292
      %295 = dma.vmem_to_hbm [thread:$0]  %s293, 64, %s7, [#allocation9]
    $region41: #{tpu_custom_call.1} parent=1 // pred_fallthru
      _
    // Predicated region
    $region42: #{tpu_custom_call.1} parent=1 // pred_check
      _
    $region43: #{tpu_custom_call.1} parent=1 // pred_check_branch
      %297 = sbr.rel (0) target = $region45
    $region44: #{tpu_custom_call.1} parent=1 // pred_region
      %298 = dma.done [#allocation4], 64
    $region45: #{tpu_custom_call.1} parent=1 // pred_fallthru
      _
    // Predicated region
    $region46: #{tpu_custom_call.1} parent=1 // pred_check
      _
    $region47: #{tpu_custom_call.1} parent=1 // pred_check_branch
      %300 = sbr.rel (0) target = $region49
    $region48: #{tpu_custom_call.1} parent=1 // pred_region
      %301 = dma.done [#allocation9], 64
    $region49: #{tpu_custom_call.1} parent=1 // pred_fallthru
      _
    %302 = vsyncpa [#allocation3], 1
    %303 = vsyncpa [#allocation6], 1
    %304 = vsyncpa [#allocation4], 1
    %305 = vsyncpa [#allocation9], 1

</llo_original>
